<compile_context>
chip_gen: v5e
topology: v5e:2x2
jax: 0.10.0
libtpu: 0.0.40
codegen_flags: <defaults>
</compile_context>

<pallas_src>
import functools
import math

import jax
import jax.numpy as jnp
from jax.experimental import pallas as pl
from jax.experimental.pallas import tpu as pltpu

_BN_EPS = 1e-5
_MASK_NEG = -1e30  # large negative for masked attention scores (underflows to 0 in softmax)


# --------------------------------------------------------------------------- #
# helpers
# --------------------------------------------------------------------------- #
def _cparams(n_grid_axes):
    # All grid axes here are independent -> "parallel" (lets v7x shard across
    # its two TensorCores); explicit vmem limit instead of the default scoped cap.
    return pltpu.CompilerParams(
        dimension_semantics=("parallel",) * n_grid_axes,
        vmem_limit_bytes=32 * 1024 * 1024,
    )


def _row_tile(n, target=256):
    """Largest row tile <= target that evenly divides n (multiple of 8), else n."""
    if n <= target:
        return n
    for t in range(target, 0, -8):
        if n % t == 0:
            return t
    return n


def _act_fn(x, kind):
    if kind == "relu":
        return jnp.maximum(x, 0.0)
    # TODO(synk): PyTorch F.gelu defaults to the exact erf form; tanh approximation used here.
    c = math.sqrt(2.0 / math.pi)
    return 0.5 * x * (1.0 + jnp.tanh(c * (x + 0.044715 * x * x * x)))


# --------------------------------------------------------------------------- #
# kernels
# --------------------------------------------------------------------------- #
def _proj_pe_kernel(x_ref, w_ref, b_ref, pe_ref, o_ref, *, scale):
    # x: (tS, F) for one (batch, seq-tile); fused (x @ W + b) * sqrt(D) + pe[tile]
    y = jnp.dot(x_ref[...], w_ref[...], preferred_element_type=jnp.float32)
    y = (y + b_ref[...]) * scale + pe_ref[...]
    o_ref[...] = y.astype(o_ref.dtype)


def _qkv_proj_kernel(x_ref, w_ref, b_ref, q_ref, k_ref, v_ref):
    d = q_ref.shape[-1]
    y = jnp.dot(x_ref[...], w_ref[...], preferred_element_type=jnp.float32) + b_ref[...]
    q_ref[...] = y[:, :d].astype(q_ref.dtype)
    k_ref[...] = y[:, d:2 * d].astype(k_ref.dtype)
    v_ref[...] = y[:, 2 * d:].astype(v_ref.dtype)


def _mha_kernel(m_ref, q_ref, k_ref, v_ref, o_ref, *, num_heads):
    # One batch element per grid step; heads are unrolled statically.
    # TODO(synk): flash-style KV tiling for long sequences (full S x S scores here).
    _, d_model = q_ref.shape
    hd = d_model // num_heads
    scale = 1.0 / math.sqrt(hd)
    keep = m_ref[...] > 0.0  # (1, S) key-keep mask, broadcasts over query rows
    heads = []
    for h in range(num_heads):
        sl = slice(h * hd, (h + 1) * hd)
        q = q_ref[:, sl]
        k = k_ref[:, sl]
        v = v_ref[:, sl]
        s = jnp.dot(q, k.T, preferred_element_type=jnp.float32) * scale
        s = jnp.where(keep, s, _MASK_NEG)
        s = s - jnp.max(s, axis=-1, keepdims=True)
        p = jnp.exp(s)
        p = p / jnp.sum(p, axis=-1, keepdims=True)
        heads.append(jnp.dot(p, v, preferred_element_type=jnp.float32))
    # Single lane-dense store of the concatenated heads.
    o_ref[...] = jnp.concatenate(heads, axis=-1).astype(o_ref.dtype)


def _linear_res_bn_kernel(x_ref, w_ref, b_ref, res_ref, g_ref, be_ref, mu_ref, var_ref, o_ref):
    # out-projection + residual add + BatchNorm1d (eval) fused epilogue.
    y = jnp.dot(x_ref[...], w_ref[...], preferred_element_type=jnp.float32) + b_ref[...]
    z = res_ref[...] + y
    inv = jax.lax.rsqrt(var_ref[...] + _BN_EPS)
    o_ref[...] = ((z - mu_ref[...]) * inv * g_ref[...] + be_ref[...]).astype(o_ref.dtype)


def _ffn_res_bn_kernel(x_ref, w1_ref, b1_ref, w2_ref, b2_ref,
                       g_ref, be_ref, mu_ref, var_ref, o_ref, *, activation):
    # linear1 -> act -> linear2 -> residual -> BatchNorm1d (eval), all in VMEM.
    x = x_ref[...]
    h = jnp.dot(x, w1_ref[...], preferred_element_type=jnp.float32) + b1_ref[...]
    h = _act_fn(h, activation)
    y = jnp.dot(h, w2_ref[...], preferred_element_type=jnp.float32) + b2_ref[...]
    z = x + y
    inv = jax.lax.rsqrt(var_ref[...] + _BN_EPS)
    o_ref[...] = ((z - mu_ref[...]) * inv * g_ref[...] + be_ref[...]).astype(o_ref.dtype)


def _act_mask_kernel(x_ref, m_ref, o_ref, *, activation):
    # final activation * padding mask (dropout is identity at inference)
    o_ref[...] = (_act_fn(x_ref[...], activation) * m_ref[...]).astype(o_ref.dtype)


def _linear_kernel(x_ref, w_ref, b_ref, o_ref):
    o_ref[...] = (jnp.dot(x_ref[...], w_ref[...], preferred_element_type=jnp.float32)
                  + b_ref[...]).astype(o_ref.dtype)


# --------------------------------------------------------------------------- #
# parameter init helpers (mirror the PyTorch module's parameter set)
# --------------------------------------------------------------------------- #
def _init_linear(key, fan_in, fan_out):
    kw, kb = jax.random.split(key)
    bound = 1.0 / math.sqrt(fan_in)
    # stored as (fan_in, fan_out) so kernels compute x @ w + b directly
    w = jax.random.uniform(kw, (fan_in, fan_out), jnp.float32, -bound, bound)
    b = jax.random.uniform(kb, (1, fan_out), jnp.float32, -bound, bound)
    return w, b


def _fixed_pe(max_len, d_model):
    pos = jnp.arange(max_len, dtype=jnp.float32)[:, None]
    div = jnp.exp(jnp.arange(0, d_model, 2, dtype=jnp.float32)
                  * (-math.log(10000.0) / d_model))
    ang = pos * div
    pe = jnp.zeros((max_len, d_model), jnp.float32)
    pe = pe.at[:, 0::2].set(jnp.sin(ang))
    pe = pe.at[:, 1::2].set(jnp.cos(ang))
    return pe


# --------------------------------------------------------------------------- #
# model
# --------------------------------------------------------------------------- #
class TSTransformerEncoderClassiregressor:
    """Inference (eval-mode) forward of the PyTorch module on Pallas TPU kernels."""

    def __init__(self, feat_dim, max_len, d_model, n_heads, num_layers,
                 dim_feedforward, num_classes, dropout=0.1, pos_encoding="fixed",
                 activation="gelu", norm="BatchNorm", freeze=False, key=None):
        assert d_model % n_heads == 0
        # TODO(synk): LayerNorm encoder-layer variant (norm='LayerNorm') not implemented.
        assert norm == "BatchNorm"
        if key is None:
            key = jax.random.PRNGKey(0)
        self.feat_dim = feat_dim
        self.max_len = max_len
        self.d_model = d_model
        self.n_heads = n_heads
        self.num_layers = num_layers
        self.dim_feedforward = dim_feedforward
        self.num_classes = num_classes
        self.activation = activation
        self.dtype = jnp.float32
        # TODO(synk): training-mode dropout (hardware PRNG / pltpu.sample_block) not implemented;
        # all dropout layers are identity at inference.

        keys = jax.random.split(key, 3 + 6 * num_layers)
        ki = iter(keys)

        self.w_in, self.b_in = _init_linear(next(ki), feat_dim, d_model)
        if pos_encoding == "fixed":
            self.pe = _fixed_pe(max_len, d_model)
        else:  # 'learnable' -> nn.init.uniform_(pe, -0.02, 0.02)
            self.pe = jax.random.uniform(next(ki), (max_len, d_model),
                                         jnp.float32, -0.02, 0.02)

        def bn_params(k):
            k1, k2, k3, k4 = jax.random.split(k, 4)
            return dict(
                gamma=1.0 + 0.1 * jax.random.normal(k1, (1, d_model), jnp.float32),
                beta=0.1 * jax.random.normal(k2, (1, d_model), jnp.float32),
                mean=0.1 * jax.random.normal(k3, (1, d_model), jnp.float32),
                var=1.0 + 0.1 * jnp.abs(jax.random.normal(k4, (1, d_model), jnp.float32)),
            )

        self.layers = []
        for _ in range(num_layers):
            w_qkv, b_qkv = _init_linear(next(ki), d_model, 3 * d_model)
            w_o, b_o = _init_linear(next(ki), d_model, d_model)
            w1, b1 = _init_linear(next(ki), d_model, dim_feedforward)
            w2, b2 = _init_linear(next(ki), dim_feedforward, d_model)
            self.layers.append(dict(
                w_qkv=w_qkv, b_qkv=b_qkv, w_o=w_o, b_o=b_o,
                w1=w1, b1=b1, w2=w2, b2=b2,
                bn1=bn_params(next(ki)), bn2=bn_params(next(ki)),
            ))

        self.w_out, self.b_out = _init_linear(next(ki), d_model * max_len, num_classes)

    # ------------------------------------------------------------------ #
    def __call__(self, X, padding_masks):
        """X: (B, S, feat_dim); padding_masks: (B, S) bool (True = keep). -> (B, num_classes)."""
        B, S, F = X.shape
        D, H, ff = self.d_model, self.n_heads, self.dim_feedforward
        assert F == self.feat_dim and S == self.max_len
        assert S % 8 == 0, "sequence length must be a multiple of 8 for the (8,128) tiling"
        X = X.astype(self.dtype)
        T = B * S

        # ---- fused: input projection * sqrt(D) + positional encoding ----
        tS = _row_tile(S)
        sgrid = S // tS
        x2d = pl.pallas_call(
            functools.partial(_proj_pe_kernel, scale=math.sqrt(D)),
            grid=(B, sgrid),
            in_specs=[
                pl.BlockSpec((None, tS, F), lambda b, i: (b, i, 0)),   # X tile
                pl.BlockSpec((F, D), lambda b, i: (0, 0)),             # W_in (resident)
                pl.BlockSpec((1, D), lambda b, i: (0, 0)),             # b_in
                pl.BlockSpec((tS, D), lambda b, i: (i, 0)),            # pe tile
            ],
            out_specs=pl.BlockSpec((tS, D), lambda b, i: (b * sgrid + i, 0)),
            out_shape=jax.ShapeDtypeStruct((T, D), self.dtype),
            compiler_params=_cparams(2),
        )(X, self.w_in, self.b_in, self.pe)

        mask_f = padding_masks.astype(self.dtype)
        mask_keys = mask_f.reshape(B, 1, S)   # key-keep mask for attention
        mask_rows = mask_f.reshape(T, 1)      # per-token mask for final zeroing

        tR = _row_tile(T)
        rgrid = T // tR

        for lp in self.layers:
            # -- QKV projection: one matmul, three lane-dense outputs --
            q2d, k2d, v2d = pl.pallas_call(
                _qkv_proj_kernel,
                grid=(rgrid,),
                in_specs=[
                    pl.BlockSpec((tR, D), lambda r: (r, 0)),
                    pl.BlockSpec((D, 3 * D), lambda r: (0, 0)),
                    pl.BlockSpec((1, 3 * D), lambda r: (0, 0)),
                ],
                out_specs=[pl.BlockSpec((tR, D), lambda r: (r, 0))] * 3,
                out_shape=[jax.ShapeDtypeStruct((T, D), self.dtype)] * 3,
                compiler_params=_cparams(1),
            )(x2d, lp["w_qkv"], lp["b_qkv"])

            # -- multi-head self-attention with key-padding mask (one batch / step) --
            attn = pl.pallas_call(
                functools.partial(_mha_kernel, num_heads=H),
                grid=(B,),
                in_specs=[
                    pl.BlockSpec((None, 1, S), lambda b: (b, 0, 0)),
                    pl.BlockSpec((S, D), lambda b: (b, 0)),
                    pl.BlockSpec((S, D), lambda b: (b, 0)),
                    pl.BlockSpec((S, D), lambda b: (b, 0)),
                ],
                out_specs=pl.BlockSpec((S, D), lambda b: (b, 0)),
                out_shape=jax.ShapeDtypeStruct((T, D), self.dtype),
                compiler_params=_cparams(1),
            )(mask_keys, q2d, k2d, v2d)

            # -- attention out-projection + residual + BatchNorm1d (eval), fused --
            bn1 = lp["bn1"]
            x2d = pl.pallas_call(
                _linear_res_bn_kernel,
                grid=(rgrid,),
                in_specs=[
                    pl.BlockSpec((tR, D), lambda r: (r, 0)),   # attn
                    pl.BlockSpec((D, D), lambda r: (0, 0)),
                    pl.BlockSpec((1, D), lambda r: (0, 0)),
                    pl.BlockSpec((tR, D), lambda r: (r, 0)),   # residual
                    pl.BlockSpec((1, D), lambda r: (0, 0)),
                    pl.BlockSpec((1, D), lambda r: (0, 0)),
                    pl.BlockSpec((1, D), lambda r: (0, 0)),
                    pl.BlockSpec((1, D), lambda r: (0, 0)),
                ],
                out_specs=pl.BlockSpec((tR, D), lambda r: (r, 0)),
                out_shape=jax.ShapeDtypeStruct((T, D), self.dtype),
                compiler_params=_cparams(1),
            )(attn, lp["w_o"], lp["b_o"], x2d,
              bn1["gamma"], bn1["beta"], bn1["mean"], bn1["var"])

            # -- feed-forward + residual + BatchNorm1d (eval), fused --
            bn2 = lp["bn2"]
            x2d = pl.pallas_call(
                functools.partial(_ffn_res_bn_kernel, activation=self.activation),
                grid=(rgrid,),
                in_specs=[
                    pl.BlockSpec((tR, D), lambda r: (r, 0)),
                    pl.BlockSpec((D, ff), lambda r: (0, 0)),
                    pl.BlockSpec((1, ff), lambda r: (0, 0)),
                    pl.BlockSpec((ff, D), lambda r: (0, 0)),
                    pl.BlockSpec((1, D), lambda r: (0, 0)),
                    pl.BlockSpec((1, D), lambda r: (0, 0)),
                    pl.BlockSpec((1, D), lambda r: (0, 0)),
                    pl.BlockSpec((1, D), lambda r: (0, 0)),
                    pl.BlockSpec((1, D), lambda r: (0, 0)),
                ],
                out_specs=pl.BlockSpec((tR, D), lambda r: (r, 0)),
                out_shape=jax.ShapeDtypeStruct((T, D), self.dtype),
                compiler_params=_cparams(1),
            )(x2d, lp["w1"], lp["b1"], lp["w2"], lp["b2"],
              bn2["gamma"], bn2["beta"], bn2["mean"], bn2["var"])

        # ---- final activation * padding mask ----
        out = pl.pallas_call(
            functools.partial(_act_mask_kernel, activation=self.activation),
            grid=(rgrid,),
            in_specs=[
                pl.BlockSpec((tR, D), lambda r: (r, 0)),
                pl.BlockSpec((tR, 1), lambda r: (r, 0)),
            ],
            out_specs=pl.BlockSpec((tR, D), lambda r: (r, 0)),
            out_shape=jax.ShapeDtypeStruct((T, D), self.dtype),
            compiler_params=_cparams(1),
        )(x2d, mask_rows)

        # ---- classifier head: (B*S, D) -> (B, S*D) is a free row-major reshape ----
        flat = out.reshape(B, S * D)
        logits = pl.pallas_call(
            _linear_kernel,
            grid=(1,),
            in_specs=[
                pl.BlockSpec((B, S * D), lambda i: (0, 0)),
                pl.BlockSpec((S * D, self.num_classes), lambda i: (0, 0)),
                pl.BlockSpec((1, self.num_classes), lambda i: (0, 0)),
            ],
            out_specs=pl.BlockSpec((B, self.num_classes), lambda i: (0, 0)),
            out_shape=jax.ShapeDtypeStruct((B, self.num_classes), self.dtype),
            compiler_params=_cparams(1),
        )(flat, self.w_out, self.b_out)
        return logits


# --------------------------------------------------------------------------- #
# pure-JAX reference (same math, eval mode)
# --------------------------------------------------------------------------- #
def reference_forward(model, X, padding_masks):
    B, S, _ = X.shape
    D, H = model.d_model, model.n_heads
    hd = D // H
    hp = jax.lax.Precision.HIGHEST
    x = jnp.einsum("bsf,fd->bsd", X.astype(model.dtype), model.w_in, precision=hp) + model.b_in
    x = x * math.sqrt(D) + model.pe[:S][None]
    keep = padding_masks.astype(model.dtype)
    for lp in model.layers:
        qkv = jnp.einsum("bsd,de->bse", x, lp["w_qkv"], precision=hp) + lp["b_qkv"]
        q, k, v = jnp.split(qkv, 3, axis=-1)
        q = q.reshape(B, S, H, hd).transpose(0, 2, 1, 3)
        k = k.reshape(B, S, H, hd).transpose(0, 2, 1, 3)
        v = v.reshape(B, S, H, hd).transpose(0, 2, 1, 3)
        s = jnp.einsum("bhqe,bhke->bhqk", q, k, precision=hp) * (1.0 / math.sqrt(hd))
        s = jnp.where(keep[:, None, None, :] > 0, s, _MASK_NEG)
        s = s - jnp.max(s, axis=-1, keepdims=True)
        p = jnp.exp(s)
        p = p / jnp.sum(p, axis=-1, keepdims=True)
        a = jnp.einsum("bhqk,bhke->bhqe", p, v, precision=hp).transpose(0, 2, 1, 3).reshape(B, S, D)
        a = jnp.einsum("bsd,de->bse", a, lp["w_o"], precision=hp) + lp["b_o"]
        z = x + a
        bn1 = lp["bn1"]
        z = (z - bn1["mean"]) * jax.lax.rsqrt(bn1["var"] + _BN_EPS) * bn1["gamma"] + bn1["beta"]
        h = _act_fn(jnp.einsum("bsd,df->bsf", z, lp["w1"], precision=hp) + lp["b1"],
                    model.activation)
        y = jnp.einsum("bsf,fd->bsd", h, lp["w2"], precision=hp) + lp["b2"]
        z2 = z + y
        bn2 = lp["bn2"]
        x = (z2 - bn2["mean"]) * jax.lax.rsqrt(bn2["var"] + _BN_EPS) * bn2["gamma"] + bn2["beta"]
    out = _act_fn(x, model.activation) * keep[:, :, None]
    out = out.reshape(B, S * D)
    return jnp.einsum("bk,kc->bc", out, model.w_out, precision=hp) + model.b_out


# --------------------------------------------------------------------------- #
# main
# --------------------------------------------------------------------------- #
if __name__ == "__main__":
    key = jax.random.PRNGKey(0)
    k_model, k_x = jax.random.split(key)

    # Small config, but with d_model = 128 so the last block dim fills a vreg lane row.
    B, S = 2, 16            # batch, sequence length (== max_len for the classifier head)
    feat_dim = 8
    d_model = 128
    n_heads = 4
    num_layers = 2
    dim_ff = 256
    num_classes = 5

    model = TSTransformerEncoderClassiregressor(
        feat_dim=feat_dim, max_len=S, d_model=d_model, n_heads=n_heads,
        num_layers=num_layers, dim_feedforward=dim_ff, num_classes=num_classes,
        dropout=0.1, pos_encoding="fixed", activation="gelu", norm="BatchNorm",
        key=k_model)

    X = jax.random.normal(k_x, (B, S, feat_dim), dtype=jnp.float32)
    # batch 0 fully valid; batch 1 has its last 5 positions padded out.
    padding_masks = jnp.arange(S)[None, :] < jnp.array([[S], [S - 5]])

    logits = model(X, padding_masks)
    logits = jax.block_until_ready(logits)

    ref = reference_forward(model, X, padding_masks)
    assert logits.shape == (B, num_classes)
    assert bool(jnp.all(jnp.isfinite(logits)))
    assert jnp.allclose(logits, ref, atol=5e-2, rtol=5e-2), (
        f"max abs diff {float(jnp.max(jnp.abs(logits - ref)))}")

    print("KERNEL_OK")
</pallas_src>

<mosaic_0001>
module attributes {stable_mosaic.version = 11 : i64} {
  func.func @_proj_pe_kernel(%arg0: i32, %arg1: i32, %arg2: memref<1x16x8xf32, #tpu.memory_space<vmem>>, %arg3: memref<8x128xf32, #tpu.memory_space<vmem>>, %arg4: memref<1x128xf32, #tpu.memory_space<vmem>>, %arg5: memref<16x128xf32, #tpu.memory_space<vmem>>, %arg6: memref<16x128xf32, #tpu.memory_space<vmem>>) attributes {dimension_semantics = [#tpu.dimension_semantics<parallel>, #tpu.dimension_semantics<parallel>], iteration_bounds = array<i64: 2, 1>, scalar_prefetch = 0 : i64, scratch_operands = 0 : i64, tpu.core_type = #tpu.core_type<tc>, window_params = [{transform_indices = @transform_0, window_bounds = array<i64: 1, 16, 8>}, {pipeline_mode = #tpu.pipeline_mode<synchronous>, transform_indices = @transform_1, window_bounds = array<i64: 8, 128>}, {pipeline_mode = #tpu.pipeline_mode<synchronous>, transform_indices = @transform_2, window_bounds = array<i64: 1, 128>}, {transform_indices = @transform_3, window_bounds = array<i64: 16, 128>}, {transform_indices = @transform_4, window_bounds = array<i64: 16, 128>}]} {
    %c0 = arith.constant 0 : index
    %c0_0 = arith.constant 0 : index
    %c0_1 = arith.constant 0 : index
    %0 = vector.load %arg2[%c0, %c0_0, %c0_1] : memref<1x16x8xf32, #tpu.memory_space<vmem>>, vector<1x16x8xf32>
    %1 = vector.shape_cast %0 : vector<1x16x8xf32> to vector<16x8xf32>
    %c0_2 = arith.constant 0 : index
    %c0_3 = arith.constant 0 : index
    %2 = vector.load %arg3[%c0_2, %c0_3] : memref<8x128xf32, #tpu.memory_space<vmem>>, vector<8x128xf32>
    %cst = arith.constant dense<0.000000e+00> : vector<16x128xf32>
    %3 = tpu.matmul %1, %2, %cst {dimension_numbers = #tpu.dot_dimension_numbers<[1], [0], [0], [1], [0, 0, 1, 1], [], []>} : vector<16x8xf32>, vector<8x128xf32>, vector<16x128xf32> -> vector<16x128xf32>
    %c0_4 = arith.constant 0 : index
    %c0_5 = arith.constant 0 : index
    %4 = vector.load %arg4[%c0_4, %c0_5] : memref<1x128xf32, #tpu.memory_space<vmem>>, vector<1x128xf32>
    %5 = vector.broadcast %4 : vector<1x128xf32> to vector<16x128xf32>
    %6 = arith.addf %3, %5 : vector<16x128xf32>
    %cst_6 = arith.constant 11.3137083 : f32
    %7 = vector.broadcast %cst_6 : f32 to vector<16x128xf32>
    %8 = arith.mulf %6, %7 : vector<16x128xf32>
    %c0_7 = arith.constant 0 : index
    %c0_8 = arith.constant 0 : index
    %9 = vector.load %arg5[%c0_7, %c0_8] : memref<16x128xf32, #tpu.memory_space<vmem>>, vector<16x128xf32>
    %10 = arith.addf %8, %9 : vector<16x128xf32>
    %c0_9 = arith.constant 0 : index
    %c0_10 = arith.constant 0 : index
    %11 = vector.load %arg6[%c0_9, %c0_10] : memref<16x128xf32, #tpu.memory_space<vmem>>, vector<16x128xf32>
    tpu.vector_store %arg6[%c0_9, %c0_10], %10 {strides = array<i32>} : memref<16x128xf32, #tpu.memory_space<vmem>>, vector<16x128xf32>,
    return
  }
  func.func @transform_0(%arg0: i32, %arg1: i32) -> (i32, i32, i32) {
    %c0_i32 = arith.constant 0 : i32
    %c0_i32_0 = arith.constant 0 : i32
    return %arg0, %arg1, %c0_i32 : i32, i32, i32
  }
  func.func @transform_1(%arg0: i32, %arg1: i32) -> (i32, i32) {
    %c0_i32 = arith.constant 0 : i32
    %c0_i32_0 = arith.constant 0 : i32
    %c0_i32_1 = arith.constant 0 : i32
    return %c0_i32, %c0_i32_0 : i32, i32
  }
  func.func @transform_2(%arg0: i32, %arg1: i32) -> (i32, i32) {
    %c0_i32 = arith.constant 0 : i32
    %c0_i32_0 = arith.constant 0 : i32
    %c0_i32_1 = arith.constant 0 : i32
    return %c0_i32, %c0_i32_0 : i32, i32
  }
  func.func @transform_3(%arg0: i32, %arg1: i32) -> (i32, i32) {
    %c0_i32 = arith.constant 0 : i32
    %c0_i32_0 = arith.constant 0 : i32
    return %arg1, %c0_i32 : i32, i32
  }
  func.func @transform_4(%arg0: i32, %arg1: i32) -> (i32, i32) {
    %c1_i32 = arith.constant 1 : i32
    %0 = arith.muli %arg0, %c1_i32 : i32
    %1 = arith.addi %0, %arg1 : i32
    %c0_i32 = arith.constant 0 : i32
    %c0_i32_0 = arith.constant 0 : i32
    return %1, %c0_i32 : i32, i32
  }
}

</mosaic_0001>

<llo_original>
// kernel: tpu_custom_call.1
$region0: #{tpu_custom_call.1}
  #allocation0 [shape = 'u32[]', space=smem, size = 0x4, offset = 0x4, fixed_abs, tag = 'smem constant byte address 0x4 - core index']
  #allocation1 [shape = 'u32[72,128]{1,0:T(1,128)}', space=vmem, size = 0x9000, scoped, tag = 'internal scratch']
  %s0 = inlined_call_operand.vmem [shape: f32[2,16,8], index: 0, kind: input, shape index: {}]
  %s1 = inlined_call_operand.vmem [shape: f32[8,128], index: 1, kind: input, shape index: {}]
  %s2 = inlined_call_operand.vmem [shape: f32[1,128], index: 2, kind: input, shape index: {}]
  %s3 = inlined_call_operand.vmem [shape: f32[16,128], index: 3, kind: input, shape index: {}]
  %s4 = inlined_call_operand.hbm [shape: f32[32,128], index: 4, kind: output, shape index: {}]
  %s5 = sld [smem:[#allocation0]]
  $region49: #{tpu_custom_call.1} parent=0
    _
  %s7 = ssub.s32 1, %s5
  %s8 = scalar_select 0, %s7, %s5
  $region1: #{tpu_custom_call.1} parent=0
    #allocation2 [shape = 'u8[16384]{0}', space=vmem, size = 0x4000, scoped, tag = 'output window, operand 0']
    #allocation3 [shape = 's32[2]{0}', space=sflag, size = 0x8, scoped, tag = 'scoped memory for tpu_custom_call.1']
    %9 = vsyncpa [#allocation3], 0
    %s10 = scalar_lea.sflag [#allocation3], 1
    %11 = vsyncpa %s10, 0
    loop: start=0, step=1, limit=4
    $region2: #{tpu_custom_call.1} parent=1 // loop_pre_header
      _
    $region3: #{tpu_custom_call.1} parent=1 // loop_header
      %s13 = sphi 0, %s17
      %p14 = scmp.ge.s32.totalorder %s13, 4
      %s20 = sphi 0, %s32
      %s21 = sphi 0, %s28
      %s22 = sphi 0, %s20
      %s23 = sphi 0, %s21
      %s24 = sphi 0, %s22
      %s25 = sphi 0, %s23
      %s37 = sphi 0, %s39
      %s40 = sphi 0, %s37
      %s41 = sphi 0, %s40
      %s57 = sphi 0, %s41
      %s61 = sphi 0, %s61
      %s63 = sphi 0, %s61
      %s64 = sphi 0, %s63
      %s78 = sphi 0, %s64
      %s82 = sphi 0, %s82
      %s84 = sphi 0, %s82
      %s85 = sphi 0, %s84
      %s99 = sphi 0, %s85
      %s105 = sphi 0, %s107
      %s108 = sphi 0, %s105
      %s109 = sphi 0, %s108
      %s125 = sphi 0, %s109
      %s133 = sphi 0, %s135
      %s136 = sphi 0, %s133
      %s137 = sphi 0, %s136
      %s153 = sphi 0, %s137
    $region4: #{tpu_custom_call.1} parent=1 // loop_header_branch
      %16 = sbr.rel (%p14) target = $region8
    $region5: #{tpu_custom_call.1} parent=1 // loop_body
      %s18 = ssub.s32 %s13, 1
      %s19 = ssub.s32 %s13, 2
      %s26 = sadd.s32 1, %s21
      %p27 = scmp.ge.s32.totalorder %s26, 1
      %s28 = scalar_select %p27, 0, %s26
      %s29 = sadd.s32 1, %s20
      %s30 = scalar_select %p27, %s29, %s20
      %p31 = scmp.ge.s32.totalorder %s30, 2
      %s32 = scalar_select %p31, 0, %s30
      %s33 = ssub.s32 %s20, %s32
      %s34 = ssub.s32 %s21, %s28
      %s35 = sor.u32 %s33, %s34
      %p36 = scmp.eq.s32.totalorder %s35, 0
      %s38 = sadd.s32 %s37, 1
      %s39 = scalar_select %p36, %s37, %s38
      %p42 = pneg %p36
      %p43 = scmp.eq.s32.totalorder %s13, 1
      %p44 = por %p42, %p43
      %p45 = scmp.ne.s32.totalorder %s37, %s40
      %p46 = scmp.eq.s32.totalorder %s13, 0
      %p47 = por %p45, %p46
      %p48 = scmp.ne.s32.totalorder %s37, %s40
      %p49 = scmp.eq.s32.totalorder %s18, 1
      %p50 = por %p48, %p49
      %p51 = scmp.ne.s32.totalorder %s40, %s41
      %p52 = scmp.eq.s32.totalorder %s18, 0
      %p53 = por %p51, %p52
      %p54 = scmp.ne.s32.totalorder %s40, %s41
      %p55 = scmp.eq.s32.totalorder %s19, 1
      %p56 = por %p54, %p55
      %p58 = scmp.ne.s32.totalorder %s41, %s57
      %p59 = scmp.eq.s32.totalorder %s19, 0
      %p60 = por %p58, %p59
      %s62 = sadd.s32 %s61, 1
      %p65 = scmp.eq.s32.totalorder %s13, 1
      %p66 = scmp.ne.s32.totalorder %s61, %s63
      %p67 = scmp.eq.s32.totalorder %s13, 0
      %p68 = por %p66, %p67
      %p69 = scmp.ne.s32.totalorder %s61, %s63
      %p70 = scmp.eq.s32.totalorder %s18, 1
      %p71 = por %p69, %p70
      %p72 = scmp.ne.s32.totalorder %s63, %s64
      %p73 = scmp.eq.s32.totalorder %s18, 0
      %p74 = por %p72, %p73
      %p75 = scmp.ne.s32.totalorder %s63, %s64
      %p76 = scmp.eq.s32.totalorder %s19, 1
      %p77 = por %p75, %p76
      %p79 = scmp.ne.s32.totalorder %s64, %s78
      %p80 = scmp.eq.s32.totalorder %s19, 0
      %p81 = por %p79, %p80
      %s83 = sadd.s32 %s82, 1
      %p86 = scmp.eq.s32.totalorder %s13, 1
      %p87 = scmp.ne.s32.totalorder %s82, %s84
      %p88 = scmp.eq.s32.totalorder %s13, 0
      %p89 = por %p87, %p88
      %p90 = scmp.ne.s32.totalorder %s82, %s84
      %p91 = scmp.eq.s32.totalorder %s18, 1
      %p92 = por %p90, %p91
      %p93 = scmp.ne.s32.totalorder %s84, %s85
      %p94 = scmp.eq.s32.totalorder %s18, 0
      %p95 = por %p93, %p94
      %p96 = scmp.ne.s32.totalorder %s84, %s85
      %p97 = scmp.eq.s32.totalorder %s19, 1
      %p98 = por %p96, %p97
      %p100 = scmp.ne.s32.totalorder %s85, %s99
      %p101 = scmp.eq.s32.totalorder %s19, 0
      %p102 = por %p100, %p101
      %s103 = ssub.s32 %s21, %s28
      %p104 = scmp.eq.s32.totalorder %s103, 0
      %s106 = sadd.s32 %s105, 1
      %s107 = scalar_select %p104, %s105, %s106
      %p110 = pneg %p104
      %p111 = scmp.eq.s32.totalorder %s13, 1
      %p112 = por %p110, %p111
      %p113 = scmp.ne.s32.totalorder %s105, %s108
      %p114 = scmp.eq.s32.totalorder %s13, 0
      %p115 = por %p113, %p114
      %p116 = scmp.ne.s32.totalorder %s105, %s108
      %p117 = scmp.eq.s32.totalorder %s18, 1
      %p118 = por %p116, %p117
      %p119 = scmp.ne.s32.totalorder %s108, %s109
      %p120 = scmp.eq.s32.totalorder %s18, 0
      %p121 = por %p119, %p120
      %p122 = scmp.ne.s32.totalorder %s108, %s109
      %p123 = scmp.eq.s32.totalorder %s19, 1
      %p124 = por %p122, %p123
      %p126 = scmp.ne.s32.totalorder %s109, %s125
      %p127 = scmp.eq.s32.totalorder %s19, 0
      %p128 = por %p126, %p127
      %s129 = sadd.s32 %s20, %s21
      %s130 = sadd.s32 %s32, %s28
      %s131 = ssub.s32 %s129, %s130
      %p132 = scmp.eq.s32.totalorder %s131, 0
      %s134 = sadd.s32 %s133, 1
      %s135 = scalar_select %p132, %s133, %s134
      %p138 = pneg %p132
      %p139 = scmp.eq.s32.totalorder %s13, 1
      %p140 = por %p138, %p139
      %p141 = scmp.ne.s32.totalorder %s133, %s136
      %p142 = scmp.eq.s32.totalorder %s13, 0
      %p143 = por %p141, %p142
      %p144 = scmp.ne.s32.totalorder %s133, %s136
      %p145 = scmp.eq.s32.totalorder %s18, 1
      %p146 = por %p144, %p145
      %p147 = scmp.ne.s32.totalorder %s136, %s137
      %p148 = scmp.eq.s32.totalorder %s18, 0
      %p149 = por %p147, %p148
      %p150 = scmp.ne.s32.totalorder %s136, %s137
      %p151 = scmp.eq.s32.totalorder %s19, 1
      %p152 = por %p150, %p151
      %p154 = scmp.ne.s32.totalorder %s137, %s153
      %p155 = scmp.eq.s32.totalorder %s19, 0
      %p156 = por %p154, %p155
      %p157 = scmp.le.s32.totalorder 1, %s13
      %p158 = scmp.lt.s32.totalorder %s13, 3
      %p159 = pnand %p157, %p158
      %p160 = pneg %p159
      // Predicated region
      $region9: #{tpu_custom_call.1} parent=5 // pred_check
        _
      $region10: #{tpu_custom_call.1} parent=5 // pred_check_branch
        %162 = sbr.rel (%p159) target = $region12
      $region11: #{tpu_custom_call.1} parent=5 // pred_region
        %s163 = ssub.s32 %s13, 1
        // Predicated region
        $region13: #{tpu_custom_call.1} parent=11 // pred_check
          %p164 = pneg %p74
        $region14: #{tpu_custom_call.1} parent=11 // pred_check_branch
          %166 = sbr.rel (%p164) target = $region16
        $region15: #{tpu_custom_call.1} parent=11 // pred_region
          _
        $region16: #{tpu_custom_call.1} parent=11 // pred_fallthru
          _
        // Predicated region
        $region17: #{tpu_custom_call.1} parent=11 // pred_check
          %p167 = pneg %p95
        $region18: #{tpu_custom_call.1} parent=11 // pred_check_branch
          %169 = sbr.rel (%p167) target = $region20
        $region19: #{tpu_custom_call.1} parent=11 // pred_region
          _
        $region20: #{tpu_custom_call.1} parent=11 // pred_fallthru
          _
        // Predicated region
        $region21: #{tpu_custom_call.1} parent=11 // pred_check
          %p170 = pneg %p121
        $region22: #{tpu_custom_call.1} parent=11 // pred_check_branch
          %172 = sbr.rel (%p170) target = $region24
        $region23: #{tpu_custom_call.1} parent=11 // pred_region
          %s173 = smul.u32 2, %s23
          %p174 = scmp.lt.s32.totalorder %s173, 1
          %s175 = scalar_select %p174, %s173, 1
          %s176 = smul.addr %s175, 8
          %s177 = scalar_lea.vmem %s3, %s176
          %s178 = smul.u32 2, %s23
        $region24: #{tpu_custom_call.1} parent=11 // pred_fallthru
          _
      $region12: #{tpu_custom_call.1} parent=5 // pred_fallthru
        _
      %p179 = scmp.lt.s32.totalorder %s13, 2
      // Predicated region
      $region25: #{tpu_custom_call.1} parent=5 // pred_check
        %p180 = pneg %p179
      $region26: #{tpu_custom_call.1} parent=5 // pred_check_branch
        %182 = sbr.rel (%p180) target = $region28
      $region27: #{tpu_custom_call.1} parent=5 // pred_region
        // Predicated region
        $region29: #{tpu_custom_call.1} parent=27 // pred_check
          %p183 = pneg %p47
        $region30: #{tpu_custom_call.1} parent=27 // pred_check_branch
          %185 = sbr.rel (%p183) target = $region32
        $region31: #{tpu_custom_call.1} parent=27 // pred_region
          %s186 = smul.u32 2, %s21
          %p187 = scmp.lt.s32.totalorder %s20, 1
          %s188 = scalar_select %p187, %s20, 1
          %p189 = scmp.lt.s32.totalorder %s186, 1
          %s190 = scalar_select %p189, %s186, 1
          %s191 = smul.addr %s188, 2
          %s192 = sadd.s32 %s190, %s191
          %s193 = smul.addr %s192, 8
          %s194 = scalar_lea.vmem %s0, %s193
          %s195 = smul.u32 2, %s21
        $region32: #{tpu_custom_call.1} parent=27 // pred_fallthru
          _
      $region28: #{tpu_custom_call.1} parent=5 // pred_fallthru
        _
      %p196 = scmp.le.s32.totalorder 1, %s13
      %p197 = scmp.lt.s32.totalorder %s13, 3
      %p198 = pnand %p196, %p197
      %p199 = pneg %p198
      // Predicated region
      $region33: #{tpu_custom_call.1} parent=5 // pred_check
        _
      $region34: #{tpu_custom_call.1} parent=5 // pred_check_branch
        %201 = sbr.rel (%p198) target = $region36
      $region35: #{tpu_custom_call.1} parent=5 // pred_region
        %s202 = ssub.s32 %s13, 1
        %s203 = smul.u32 2, %s23
        %p204 = scmp.lt.s32.totalorder %s22, 1
        %s205 = scalar_select %p204, %s22, 1
        %p206 = scmp.lt.s32.totalorder %s203, 1
        %s207 = scalar_select %p206, %s203, 1
        %s208 = smul.addr %s205, 2
        %s209 = sadd.s32 %s207, %s208
        %s210 = smul.addr %s209, 8
        %s211 = scalar_lea.vmem %s0, %s210
        %p212 = pneg %p53
        %p213 = pneg %p50
        %p214 = pneg %p74
        %p215 = pneg %p71
        %p216 = pneg %p95
        %p217 = pneg %p92
        %s218 = smul.u32 2, %s23
        %p219 = scmp.lt.s32.totalorder %s218, 1
        %s220 = scalar_select %p219, %s218, 1
        %s221 = smul.addr %s220, 8
        %s222 = scalar_lea.vmem %s3, %s221
        %p223 = pneg %p121
        %p224 = pneg %p118
        %p225 = pneg %p149
        %p226 = pneg %p146
        %s227 = sand.u32 %s136, 1
        %s228 = scalar_lea.sflag [#allocation3], %s227
        %s229 = sand.u32 %s136, 1
        %s230 = smul.addr %s229, 16
        %s231 = scalar_lea.vmem [#allocation2], %s230
        %s232 = smul.u32 2, %s23
        %p233 = scmp.lt.s32.totalorder %s22, 1
        %s234 = scalar_select %p233, %s22, 1
        %p235 = scmp.lt.s32.totalorder %s232, 1
        %s236 = scalar_select %p235, %s232, 1
        %s237 = smul.addr %s234, 2
        %s238 = sadd.s32 %s236, %s237
        %s239 = smul.addr %s238, 8
        %s240 = scalar_lea.vmem %s0, %s239
        %s241 = smul.u32 2, %s23
        %s242 = smul.u32 2, %s23
        %p243 = scmp.lt.s32.totalorder %s242, 1
        %s244 = scalar_select %p243, %s242, 1
        %s245 = smul.addr %s244, 8
        %s246 = scalar_lea.vmem %s3, %s245
        %s247 = smul.u32 2, %s23
        %s248 = sadd.s32 %s22, %s23
        %s249 = smul.u32 2, %s248
        %v250 = vld [vmem:[%s240] sm:$0xff]
        %v251 = vld [vmem:[%s240 + $0x8] sm:$0xff]
        %v252 = vld [vmem:[%s1] sm:$0xff]
        %v253 = vld [vmem:[%s2] sm:$0x1]
        %v255 = vperm.slane %v253, 0
        %vm257 = vcmask 64512
        %v259 = vsel %vm257, %v250, 0
        %v262 = vsel %vm257, %v251, 0
        %264 = vmatpush.msra.mxu0 0.0
        %265 = vmatpush.msra.mxu0 0.0
        %266 = vmatpush.msra.mxu0 0.0
        %267 = vmatpush.msra.mxu0 0.0
        %268 = vmatpush.msra.mxu0 0.0
        %269 = vmatpush.msra.mxu0 0.0
        %270 = vmatpush.msra.mxu0 0.0
        %271 = vmatpush.msra.mxu0 0.0
        %272 = vmatpush.msra.mxu0 0.0
        %273 = vmatpush.msra.mxu0 0.0
        %274 = vmatpush.msra.mxu0 0.0
        %275 = vmatpush.msra.mxu0 0.0
        %276 = vmatpush.msra.mxu0 0.0
        %277 = vmatpush.msra.mxu0 0.0
        %278 = vmatpush.msra.mxu0 0.0
        %279 = vmatpush.msra.mxu0 %v252
        %280 = vmatmul.f32.gmra.mxu0 %v259
        %v281 = vpop.f32.mrf.mxu0
        %v282 = vadd.f32 %v255, %v281
        %283 = vmatmul.f32.gmra.mxu0 %v262
        %v284 = vpop.f32.mrf.mxu0
        %v285 = vadd.f32 %v255, %v284
        %286 = vdwg.mxu0
        %v287 = vmul.f32 %v282, 11.313708
        %v288 = vmul.f32 %v285, 11.313708
        %v289 = vld [vmem:[%s246] sm:$0xff]
        %v290 = vld [vmem:[%s246 + $0x8] sm:$0xff]
        %v291 = vadd.f32 %v287, %v289
        %v292 = vadd.f32 %v288, %v290
        %293 = vst [vmem:[%s231] sm:$0xff] %v291
        %294 = vst [vmem:[%s231 + $0x8] sm:$0xff] %v292
        %s295 = sand.u32 %s136, 1
        %s296 = scalar_lea.sflag [#allocation3], %s295
        %s297 = sand.u32 %s136, 1
        %s298 = smul.addr %s297, 16
        %s299 = scalar_lea.vmem [#allocation2], %s298
        // Predicated region
        $region37: #{tpu_custom_call.1} parent=35 // pred_check
          %p300 = pneg %p146
        $region38: #{tpu_custom_call.1} parent=35 // pred_check_branch
          %302 = sbr.rel (%p300) target = $region40
        $region39: #{tpu_custom_call.1} parent=35 // pred_region
          %s303 = sadd.s32 %s22, %s23
          %s304 = smul.u32 2, %s303
          %306 = vsyncadd %s296, 0
          %s307 = smul.addr %s304, 8
          %s308 = scalar_lea.hbm %s4, %s307
          %s309 = sshll.u32 %s299, 4
          %s310 = int_to_ptr.vmem [resolvable:$true] %s309
          %s311 = sshll.u32 %s308, 4
          %s312 = int_to_ptr.hbm [resolvable:$true] %s311
          %317 = dma.vmem_to_hbm [thread:$0]  %s310, 256, %s312, %s296, 128, 128, 8
        $region40: #{tpu_custom_call.1} parent=35 // pred_fallthru
          _
      $region36: #{tpu_custom_call.1} parent=5 // pred_fallthru
        _
      %p318 = scmp.le.s32.totalorder 2, %s13
      // Predicated region
      $region41: #{tpu_custom_call.1} parent=5 // pred_check
        %p319 = pneg %p318
      $region42: #{tpu_custom_call.1} parent=5 // pred_check_branch
        %321 = sbr.rel (%p319) target = $region44
      $region43: #{tpu_custom_call.1} parent=5 // pred_region
        %s322 = ssub.s32 %s13, 2
        // Predicated region
        $region45: #{tpu_custom_call.1} parent=43 // pred_check
          %p323 = pneg %p152
        $region46: #{tpu_custom_call.1} parent=43 // pred_check_branch
          %325 = sbr.rel (%p323) target = $region48
        $region47: #{tpu_custom_call.1} parent=43 // pred_region
          %s326 = sand.u32 %s137, 1
          %s327 = scalar_lea.sflag [#allocation3], %s326
          %s328 = sand.u32 %s137, 1
          %s329 = smul.addr %s328, 16
          %s330 = scalar_lea.vmem [#allocation2], %s329
          %332 = dma.done %s327, 256
        $region48: #{tpu_custom_call.1} parent=43 // pred_fallthru
          _
      $region44: #{tpu_custom_call.1} parent=5 // pred_fallthru
        _
    $region6: #{tpu_custom_call.1} parent=1 // loop_footer
      %s17 = sadd.s32 1, %s13
    $region7: #{tpu_custom_call.1} parent=1 // loop_footer_branch
      %12 = sbr.rel target = $region3
    $region8: #{tpu_custom_call.1} parent=1 // loop_exit
      _
    %333 = vsyncpa [#allocation3], 1
    %s334 = scalar_lea.sflag [#allocation3], 1
    %335 = vsyncpa %s334, 1

</llo_original>
